<compile_context>
chip_gen: v7x
topology: tpu7x:2x2x1
jax: 0.10.0
libtpu: 0.0.40
codegen_flags: <defaults>
</compile_context>

<pallas_src>
import numpy as np
import jax
import jax.numpy as jnp
from jax.experimental import pallas as pl
from jax.experimental.pallas import tpu as pltpu

# Wrapped MLP dims (PyTorch nn.Linear stores weights as (out, in)).
D_IN, D_HID, D_OUT = 32, 32, 16

# flat_param layout mirrors named_parameters() traversal:
#   fc1.weight, fc1.bias, fc2.weight, fc2.bias
_PARAM_SHAPES = ((D_HID, D_IN), (D_HID,), (D_OUT, D_HID), (D_OUT,))
_PARAM_NUMELS = tuple(int(np.prod(s)) for s in _PARAM_SHAPES)
_PARAM_OFFSETS = np.cumsum((0,) + _PARAM_NUMELS)
PARAM_NUMEL = int(_PARAM_OFFSETS[-1])

# TPU-friendly packed parameter slab: one lane-dense (SLAB_ROWS, 128) array.
LANES = 128
MAX_B_TILE = 512                # max x rows per grid step
D_HID_PAD = 128                 # hidden padded to full lane width
D_OUT_PAD = 128                 # lane-dense output width (sliced in wrapper)

ROW_W1 = 0                      # W1^T : (D_IN, D_HID_PAD)      rows [0, 32)
ROW_B1 = ROW_W1 + D_IN          # b1   : (1, D_HID_PAD)         row  32
ROW_W2 = 40                     # W2^T : (D_HID_PAD, D_OUT_PAD) rows [40, 168)
ROW_B2 = ROW_W2 + D_HID_PAD     # b2   : (1, D_OUT_PAD)         row  168
SLAB_ROWS = 176                 # multiple of 8


def _mlp_kernel(x_ref, p_ref, o_ref):
    """relu(x @ W1^T + b1) @ W2^T + b2 on one (b_tile, D_IN) batch tile."""
    x = x_ref[...]                                      # (b_tile, D_IN)

    # Static, sublane-aligned carves out of the single parameter slab.
    w1t = p_ref[ROW_W1:ROW_W1 + D_IN, :]                # (D_IN, 128)
    b1 = p_ref[ROW_B1:ROW_B1 + 1, :]                    # (1, 128)
    w2t = p_ref[ROW_W2:ROW_W2 + D_HID_PAD, :]           # (128, 128)
    b2 = p_ref[ROW_B2:ROW_B2 + 1, :]                    # (1, 128)

    # Weights are stored pre-transposed => canonical MXU contraction.
    h = jnp.dot(x, w1t, preferred_element_type=jnp.float32)   # (b_tile, 128)
    h = jnp.maximum(h + b1, 0.0)                               # bias + ReLU (f32 VPU)
    y = jnp.dot(h, w2t, preferred_element_type=jnp.float32)   # (b_tile, 128)
    o_ref[...] = (y + b2).astype(o_ref.dtype)                  # lane-dense store


def _unflatten_param(flat_param):
    """Equivalent of ReparamModule._unflatten_param (split + view)."""
    o = _PARAM_OFFSETS
    w1 = flat_param[o[0]:o[1]].reshape(D_HID, D_IN)
    b1 = flat_param[o[1]:o[2]]
    w2 = flat_param[o[2]:o[3]].reshape(D_OUT, D_HID)
    b2 = flat_param[o[3]:o[4]]
    return w1, b1, w2, b2


def _build_param_slab(flat_param):
    """Pack transposed + zero-padded params into one (176, 128) slab (one DMA)."""
    w1, b1, w2, b2 = _unflatten_param(flat_param)
    slab = jnp.zeros((SLAB_ROWS, LANES), dtype=flat_param.dtype)
    slab = slab.at[ROW_W1:ROW_W1 + D_IN, :D_HID].set(w1.T)
    slab = slab.at[ROW_B1, :D_HID].set(b1)
    slab = slab.at[ROW_W2:ROW_W2 + D_HID, :D_OUT].set(w2.T)
    slab = slab.at[ROW_B2, :D_OUT].set(b2)
    return slab


def _round_up(n, m):
    return ((n + m - 1) // m) * m


@jax.jit
def reparam_forward(x, flat_param):
    """ReparamModule.forward(x, flat_param=flat_param), no buffers."""
    # TODO(synk): buffers=... path (replaced_buffers) and torch.jit tracing are
    # host-side module bookkeeping with no kernel equivalent; only the
    # flat_param forward is implemented.
    flat_param = jnp.squeeze(flat_param)        # forward() does torch.squeeze first
    slab = _build_param_slab(flat_param)

    b = x.shape[0]
    # Adaptive batch tile: single minimally-padded tile for small batches,
    # 512-row streaming tiles for large ones.  All decisions are static
    # (shape-derived) under jit.
    b_tile = min(MAX_B_TILE, _round_up(b, 8))
    n_tiles = pl.cdiv(b, b_tile)
    b_pad = n_tiles * b_tile
    if b_pad != b:                               # static under jit
        x = jnp.pad(x, ((0, b_pad - b), (0, 0)))

    out = pl.pallas_call(
        _mlp_kernel,
        out_shape=jax.ShapeDtypeStruct((b_pad, D_OUT_PAD), x.dtype),
        grid=(n_tiles,),
        in_specs=[
            # streaming batch tiles
            pl.BlockSpec((b_tile, D_IN), lambda i: (i, 0)),
            # grid-invariant parameter slab (same block every step -> no re-DMA)
            pl.BlockSpec((SLAB_ROWS, LANES), lambda i: (0, 0)),
        ],
        out_specs=pl.BlockSpec((b_tile, D_OUT_PAD), lambda i: (i, 0)),
        compiler_params=pltpu.CompilerParams(
            dimension_semantics=("parallel",)),   # shards batch across v7x's 2 TCs
    )(x, slab)

    # Drop batch padding and the lane padding of the output.
    return out[:b, :D_OUT]


def _reference_forward(x, flat_param):
    """Pure-JAX reference of the same forward (correctness check)."""
    flat_param = jnp.squeeze(flat_param)
    w1, b1, w2, b2 = _unflatten_param(flat_param)
    h = jnp.maximum(x @ w1.T + b1, 0.0)
    return h @ w2.T + b2


if __name__ == "__main__":
    key = jax.random.PRNGKey(0)
    kx, k1, k2, k3, k4 = jax.random.split(key, 5)

    # Batch large enough to exercise row padding + the adaptive tile path, but
    # still tiny in bytes.
    B = 200
    x = jax.random.normal(kx, (B, D_IN), dtype=jnp.float32)

    # Deterministic params, concatenated exactly like
    # torch.cat([p.reshape(-1) for p in params]).
    w1 = jax.random.normal(k1, (D_HID, D_IN), dtype=jnp.float32) * 0.1
    b1 = jax.random.normal(k2, (D_HID,), dtype=jnp.float32) * 0.1
    w2 = jax.random.normal(k3, (D_OUT, D_HID), dtype=jnp.float32) * 0.1
    b2 = jax.random.normal(k4, (D_OUT,), dtype=jnp.float32) * 0.1
    flat_param = jnp.concatenate(
        [w1.reshape(-1), b1.reshape(-1), w2.reshape(-1), b2.reshape(-1)], axis=0
    )
    assert flat_param.shape == (PARAM_NUMEL,)

    # flat_param often arrives as (1, P) in the distillation loop; exercises squeeze.
    out = reparam_forward(x, flat_param[None, :])
    out = jax.block_until_ready(out)

    ref = _reference_forward(x, flat_param)
    np.testing.assert_allclose(np.asarray(out), np.asarray(ref), rtol=1e-5, atol=1e-5)

    # Also exercise the multi-tile streaming path (B > MAX_B_TILE).
    B2 = 1300
    x2 = jax.random.normal(kx, (B2, D_IN), dtype=jnp.float32)
    out2 = jax.block_until_ready(reparam_forward(x2, flat_param[None, :]))
    ref2 = _reference_forward(x2, flat_param)
    np.testing.assert_allclose(np.asarray(out2), np.asarray(ref2), rtol=1e-5, atol=1e-5)

    print("KERNEL_OK")
</pallas_src>

<mosaic_0001>
module attributes {stable_mosaic.version = 11 : i64} {
  func.func @_mlp_kernel(%arg0: i32, %arg1: memref<200x32xf32, #tpu.memory_space<vmem>>, %arg2: memref<176x128xf32, #tpu.memory_space<vmem>>, %arg3: memref<200x128xf32, #tpu.memory_space<vmem>>) attributes {dimension_semantics = [#tpu.dimension_semantics<parallel>], iteration_bounds = array<i64: 1>, scalar_prefetch = 0 : i64, scratch_operands = 0 : i64, tpu.core_type = #tpu.core_type<tc>, window_params = [{transform_indices = @transform_0, window_bounds = array<i64: 200, 32>}, {pipeline_mode = #tpu.pipeline_mode<synchronous>, transform_indices = @transform_1, window_bounds = array<i64: 176, 128>}, {transform_indices = @transform_2, window_bounds = array<i64: 200, 128>}]} {
    %c0 = arith.constant 0 : index
    %c0_0 = arith.constant 0 : index
    %0 = vector.load %arg1[%c0, %c0_0] : memref<200x32xf32, #tpu.memory_space<vmem>>, vector<200x32xf32>
    %c0_1 = arith.constant 0 : index
    %c0_2 = arith.constant 0 : index
    %1 = vector.load %arg2[%c0_1, %c0_2] : memref<176x128xf32, #tpu.memory_space<vmem>>, vector<32x128xf32>
    %c32 = arith.constant 32 : index
    %c0_3 = arith.constant 0 : index
    %2 = vector.load %arg2[%c32, %c0_3] : memref<176x128xf32, #tpu.memory_space<vmem>>, vector<1x128xf32>
    %c40 = arith.constant 40 : index
    %c0_4 = arith.constant 0 : index
    %3 = vector.load %arg2[%c40, %c0_4] : memref<176x128xf32, #tpu.memory_space<vmem>>, vector<128x128xf32>
    %c168 = arith.constant 168 : index
    %c0_5 = arith.constant 0 : index
    %4 = vector.load %arg2[%c168, %c0_5] : memref<176x128xf32, #tpu.memory_space<vmem>>, vector<1x128xf32>
    %cst = arith.constant dense<0.000000e+00> : vector<200x128xf32>
    %5 = tpu.matmul %0, %1, %cst {dimension_numbers = #tpu.dot_dimension_numbers<[1], [0], [0], [1], [0, 0, 1, 1], [], []>} : vector<200x32xf32>, vector<32x128xf32>, vector<200x128xf32> -> vector<200x128xf32>
    %6 = vector.broadcast %2 : vector<1x128xf32> to vector<200x128xf32>
    %7 = arith.addf %5, %6 : vector<200x128xf32>
    %cst_6 = arith.constant 0.000000e+00 : f32
    %8 = vector.broadcast %cst_6 : f32 to vector<200x128xf32>
    %9 = arith.maximumf %7, %8 : vector<200x128xf32>
    %cst_7 = arith.constant dense<0.000000e+00> : vector<200x128xf32>
    %10 = tpu.matmul %9, %3, %cst_7 {dimension_numbers = #tpu.dot_dimension_numbers<[1], [0], [0], [1], [0, 0, 1, 1], [], []>} : vector<200x128xf32>, vector<128x128xf32>, vector<200x128xf32> -> vector<200x128xf32>
    %11 = vector.broadcast %4 : vector<1x128xf32> to vector<200x128xf32>
    %12 = arith.addf %10, %11 : vector<200x128xf32>
    %c0_8 = arith.constant 0 : index
    %c0_9 = arith.constant 0 : index
    %13 = vector.load %arg3[%c0_8, %c0_9] : memref<200x128xf32, #tpu.memory_space<vmem>>, vector<200x128xf32>
    tpu.vector_store %arg3[%c0_8, %c0_9], %12 {strides = array<i32>} : memref<200x128xf32, #tpu.memory_space<vmem>>, vector<200x128xf32>,
    return
  }
  func.func @transform_0(%arg0: i32) -> (i32, i32) {
    %c0_i32 = arith.constant 0 : i32
    %c0_i32_0 = arith.constant 0 : i32
    return %arg0, %c0_i32 : i32, i32
  }
  func.func @transform_1(%arg0: i32) -> (i32, i32) {
    %c0_i32 = arith.constant 0 : i32
    %c0_i32_0 = arith.constant 0 : i32
    %c0_i32_1 = arith.constant 0 : i32
    return %c0_i32, %c0_i32_0 : i32, i32
  }
  func.func @transform_2(%arg0: i32) -> (i32, i32) {
    %c0_i32 = arith.constant 0 : i32
    %c0_i32_0 = arith.constant 0 : i32
    return %arg0, %c0_i32 : i32, i32
  }
}

</mosaic_0001>

<llo_original>
// kernel: reparam_forward.1
$region0: #{reparam_forward.1}
  #allocation0 [shape = 'u32[]', space=smem, size = 0x4, offset = 0x4, fixed_abs, tag = 'smem constant byte address 0x4 - core index']
  #allocation1 [shape = 'u32[144,128]{1,0:T(1,128)}', space=vmem, size = 0x12000, scoped, tag = 'internal scratch']
  %s0 = inlined_call_operand.vmem [shape: f32[200,32], index: 0, kind: input, shape index: {}]
  %s1 = inlined_call_operand.vmem [shape: f32[176,128], index: 1, kind: input, shape index: {}]
  %s2 = inlined_call_operand.vmem [shape: f32[200,128], index: 2, kind: output, shape index: {}]
  %s3 = sld [smem:[#allocation0]]
  $region18: #{reparam_forward.1} parent=0
    _
  %s5 = ssub.s32 1, %s3
  %s6 = scalar_select 0, %s5, %s3
  // Predicated region
  $region2: #{reparam_forward.1} parent=0 // pred_check
    _
  $region3: #{reparam_forward.1} parent=0 // pred_check_branch
    %8 = sbr.rel (0) target = $region5
  $region4: #{reparam_forward.1} parent=0 // pred_region
    _
  $region5: #{reparam_forward.1} parent=0 // pred_fallthru
    _
  // Predicated region
  $region6: #{reparam_forward.1} parent=0 // pred_check
    _
  $region7: #{reparam_forward.1} parent=0 // pred_check_branch
    %10 = sbr.rel (0) target = $region9
  $region8: #{reparam_forward.1} parent=0 // pred_region
    _
  $region9: #{reparam_forward.1} parent=0 // pred_fallthru
    _
  %v11 = vld [vmem:[%s0] sm:$0xff]
  %v12 = vld [vmem:[%s0 + $0x8] sm:$0xff]
  %v13 = vld [vmem:[%s0 + $0x10] sm:$0xff]
  %v14 = vld [vmem:[%s0 + $0x18] sm:$0xff]
  %v15 = vld [vmem:[%s0 + $0x20] sm:$0xff]
  %v16 = vld [vmem:[%s0 + $0x28] sm:$0xff]
  %v17 = vld [vmem:[%s0 + $0x30] sm:$0xff]
  %v18 = vld [vmem:[%s0 + $0x38] sm:$0xff]
  %v19 = vld [vmem:[%s0 + $0x40] sm:$0xff]
  %v20 = vld [vmem:[%s0 + $0x48] sm:$0xff]
  %v21 = vld [vmem:[%s0 + $0x50] sm:$0xff]
  %v22 = vld [vmem:[%s0 + $0x58] sm:$0xff]
  %v23 = vld [vmem:[%s0 + $0x60] sm:$0xff]
  %v24 = vld [vmem:[%s0 + $0x68] sm:$0xff]
  %v25 = vld [vmem:[%s0 + $0x70] sm:$0xff]
  %v26 = vld [vmem:[%s0 + $0x78] sm:$0xff]
  %v27 = vld [vmem:[%s0 + $0x80] sm:$0xff]
  %v28 = vld [vmem:[%s0 + $0x88] sm:$0xff]
  %v29 = vld [vmem:[%s0 + $0x90] sm:$0xff]
  %v30 = vld [vmem:[%s0 + $0x98] sm:$0xff]
  %v31 = vld [vmem:[%s0 + $0xa0] sm:$0xff]
  %v32 = vld [vmem:[%s0 + $0xa8] sm:$0xff]
  %v33 = vld [vmem:[%s0 + $0xb0] sm:$0xff]
  %v34 = vld [vmem:[%s0 + $0xb8] sm:$0xff]
  %v35 = vld [vmem:[%s0 + $0xc0] sm:$0xff]
  %v36 = vld [vmem:[%s1] sm:$0xff]
  %v37 = vld [vmem:[%s1 + $0x8] sm:$0xff]
  %v38 = vld [vmem:[%s1 + $0x10] sm:$0xff]
  %v39 = vld [vmem:[%s1 + $0x18] sm:$0xff]
  %v40 = vld [vmem:[%s1 + $0x20] sm:$0x1]
  %v41 = vld [vmem:[%s1 + $0x28] sm:$0xff]
  %v42 = vld [vmem:[%s1 + $0x30] sm:$0xff]
  %v43 = vld [vmem:[%s1 + $0x38] sm:$0xff]
  %v44 = vld [vmem:[%s1 + $0x40] sm:$0xff]
  %v45 = vld [vmem:[%s1 + $0x48] sm:$0xff]
  %v46 = vld [vmem:[%s1 + $0x50] sm:$0xff]
  %v47 = vld [vmem:[%s1 + $0x58] sm:$0xff]
  %v48 = vld [vmem:[%s1 + $0x60] sm:$0xff]
  %v49 = vld [vmem:[%s1 + $0x68] sm:$0xff]
  %v50 = vld [vmem:[%s1 + $0x70] sm:$0xff]
  %v51 = vld [vmem:[%s1 + $0x78] sm:$0xff]
  %v52 = vld [vmem:[%s1 + $0x80] sm:$0xff]
  %v53 = vld [vmem:[%s1 + $0x88] sm:$0xff]
  %v54 = vld [vmem:[%s1 + $0x90] sm:$0xff]
  %v55 = vld [vmem:[%s1 + $0x98] sm:$0xff]
  %v56 = vld [vmem:[%s1 + $0xa0] sm:$0xff]
  %v57 = vld [vmem:[%s1 + $0xa8] sm:$0x1]
  %v58 = vlaneseq
  %v59 = vshrl.u32 %v58, 7
  %v60 = vsub.s32 0, %v59
  %v61 = vrot.slane %v40, %v60
  %vm62 = vcmask 261120
  %v64 = vsel %vm62, %v11, 0
  %v67 = vsel %vm62, %v12, 0
  %v70 = vsel %vm62, %v13, 0
  %v73 = vsel %vm62, %v14, 0
  %v76 = vsel %vm62, %v15, 0
  %v79 = vsel %vm62, %v16, 0
  %v82 = vsel %vm62, %v17, 0
  %v85 = vsel %vm62, %v18, 0
  %v88 = vsel %vm62, %v19, 0
  %v91 = vsel %vm62, %v20, 0
  %v94 = vsel %vm62, %v21, 0
  %v97 = vsel %vm62, %v22, 0
  %v100 = vsel %vm62, %v23, 0
  %v103 = vsel %vm62, %v24, 0
  %v106 = vsel %vm62, %v25, 0
  %v109 = vsel %vm62, %v26, 0
  %v112 = vsel %vm62, %v27, 0
  %v115 = vsel %vm62, %v28, 0
  %v118 = vsel %vm62, %v29, 0
  %v121 = vsel %vm62, %v30, 0
  %v124 = vsel %vm62, %v31, 0
  %v127 = vsel %vm62, %v32, 0
  %v130 = vsel %vm62, %v33, 0
  %v133 = vsel %vm62, %v34, 0
  %v136 = vsel %vm62, %v35, 0
  %138 = vmatprep.subr.mxu0 0.0
  %139 = vmatpush1.msra.mxu0 %v36
  %140 = vmatprep.subr.mxu0 0.0
  %141 = vmatpush1.msra.mxu0 %v37
  %142 = vmatprep.subr.mxu0 0.0
  %143 = vmatpush1.msra.mxu0 %v38
  %144 = vmatprep.subr.mxu0 0.0
  %145 = vmatpush1.msra.mxu0 %v39
  %146 = vmatprep.subr.mxu0 0.0
  %147 = vmatpush1.msra.mxu0 0.0
  %148 = vmatprep.subr.mxu0 0.0
  %149 = vmatpush1.msra.mxu0 0.0
  %150 = vmatprep.subr.mxu0 0.0
  %151 = vmatpush1.msra.mxu0 0.0
  %152 = vmatprep.subr.mxu0 0.0
  %153 = vmatpush1.msra.mxu0 0.0
  %154 = vmatprep.subr.mxu0 0.0
  %155 = vmatpush1.msra.mxu0 0.0
  %156 = vmatprep.subr.mxu0 0.0
  %157 = vmatpush1.msra.mxu0 0.0
  %158 = vmatprep.subr.mxu0 0.0
  %159 = vmatpush1.msra.mxu0 0.0
  %160 = vmatprep.subr.mxu0 0.0
  %161 = vmatpush1.msra.mxu0 0.0
  %162 = vmatprep.subr.mxu0 0.0
  %163 = vmatpush1.msra.mxu0 0.0
  %164 = vmatprep.subr.mxu0 0.0
  %165 = vmatpush1.msra.mxu0 0.0
  %166 = vmatprep.subr.mxu0 0.0
  %167 = vmatpush1.msra.mxu0 0.0
  %168 = vmatprep.subr.mxu0 0.0
  %169 = vmatpush1.msra.mxu0 0.0
  %170 = vmatprep.subr.mxu0 0.0
  %171 = vmatpush1.msra.mxu0 0.0
  %172 = vmatprep.subr.mxu0 0.0
  %173 = vmatpush1.msra.mxu0 0.0
  %174 = vmatprep.subr.mxu0 0.0
  %175 = vmatpush1.msra.mxu0 0.0
  %176 = vmatprep.subr.mxu0 0.0
  %177 = vmatpush1.msra.mxu0 0.0
  %178 = vmatprep.subr.mxu0 0.0
  %179 = vmatpush1.msra.mxu0 0.0
  %180 = vmatprep.subr.mxu0 0.0
  %181 = vmatpush1.msra.mxu0 0.0
  %182 = vmatprep.subr.mxu0 0.0
  %183 = vmatpush1.msra.mxu0 0.0
  %184 = vmatprep.subr.mxu0 0.0
  %185 = vmatpush1.msra.mxu0 0.0
  %186 = vmatprep.subr.mxu0 0.0
  %187 = vmatpush1.msra.mxu0 0.0
  %188 = vmatprep.subr.mxu0 0.0
  %189 = vmatpush1.msra.mxu0 0.0
  %190 = vmatprep.subr.mxu0 0.0
  %191 = vmatpush1.msra.mxu0 0.0
  %192 = vmatprep.subr.mxu0 0.0
  %193 = vmatpush1.msra.mxu0 0.0
  %194 = vmatprep.subr.mxu0 0.0
  %195 = vmatpush1.msra.mxu0 0.0
  %196 = vmatprep.subr.mxu0 0.0
  %197 = vmatpush1.msra.mxu0 0.0
  %198 = vmatprep.subr.mxu0 0.0
  %199 = vmatpush1.msra.mxu0 0.0
  %200 = vmatprep.subr.mxu0 0.0
  %201 = vmatpush1.msra.mxu0 0.0
  %202 = vmatprep.mubr.f32.mxu0 0.0
  %203 = vmatmul.mubr.f32.gmra.mrb[0].mxu0 %v64
  %v204 = vpop.f32.mrb[0].mxu0
  %v205 = vadd.f32 %v61, %v204
  %v206 = vpop.f32.mrb[0].mxu0
  %207 = vmatprep.mubr.f32.mxu0 0.0
  %208 = vmatmul.mubr.f32.gmra.mrb[0].mxu0 %v67
  %v209 = vpop.f32.mrb[0].mxu0
  %v210 = vadd.f32 %v61, %v209
  %v211 = vpop.f32.mrb[0].mxu0
  %212 = vmatprep.mubr.f32.mxu0 0.0
  %213 = vmatmul.mubr.f32.gmra.mrb[0].mxu0 %v70
  %v214 = vpop.f32.mrb[0].mxu0
  %v215 = vadd.f32 %v61, %v214
  %v216 = vpop.f32.mrb[0].mxu0
  %217 = vmatprep.mubr.f32.mxu0 0.0
  %218 = vmatmul.mubr.f32.gmra.mrb[0].mxu0 %v73
  %v219 = vpop.f32.mrb[0].mxu0
  %v220 = vadd.f32 %v61, %v219
  %v221 = vpop.f32.mrb[0].mxu0
  %222 = vmatprep.mubr.f32.mxu0 0.0
  %223 = vmatmul.mubr.f32.gmra.mrb[0].mxu0 %v76
  %v224 = vpop.f32.mrb[0].mxu0
  %v225 = vadd.f32 %v61, %v224
  %v226 = vpop.f32.mrb[0].mxu0
  %227 = vmatprep.mubr.f32.mxu0 0.0
  %228 = vmatmul.mubr.f32.gmra.mrb[0].mxu0 %v79
  %v229 = vpop.f32.mrb[0].mxu0
  %v230 = vadd.f32 %v61, %v229
  %v231 = vpop.f32.mrb[0].mxu0
  %232 = vmatprep.mubr.f32.mxu0 0.0
  %233 = vmatmul.mubr.f32.gmra.mrb[0].mxu0 %v82
  %v234 = vpop.f32.mrb[0].mxu0
  %v235 = vadd.f32 %v61, %v234
  %v236 = vpop.f32.mrb[0].mxu0
  %237 = vmatprep.mubr.f32.mxu0 0.0
  %238 = vmatmul.mubr.f32.gmra.mrb[0].mxu0 %v85
  %v239 = vpop.f32.mrb[0].mxu0
  %v240 = vadd.f32 %v61, %v239
  %v241 = vpop.f32.mrb[0].mxu0
  %242 = vmatprep.mubr.f32.mxu0 0.0
  %243 = vmatmul.mubr.f32.gmra.mrb[0].mxu0 %v88
  %v244 = vpop.f32.mrb[0].mxu0
  %v245 = vadd.f32 %v61, %v244
  %v246 = vpop.f32.mrb[0].mxu0
  %247 = vmatprep.mubr.f32.mxu0 0.0
  %248 = vmatmul.mubr.f32.gmra.mrb[0].mxu0 %v91
  %v249 = vpop.f32.mrb[0].mxu0
  %v250 = vadd.f32 %v61, %v249
  %v251 = vpop.f32.mrb[0].mxu0
  %252 = vmatprep.mubr.f32.mxu0 0.0
  %253 = vmatmul.mubr.f32.gmra.mrb[0].mxu0 %v94
  %v254 = vpop.f32.mrb[0].mxu0
  %v255 = vadd.f32 %v61, %v254
  %v256 = vpop.f32.mrb[0].mxu0
  %257 = vmatprep.mubr.f32.mxu0 0.0
  %258 = vmatmul.mubr.f32.gmra.mrb[0].mxu0 %v97
  %v259 = vpop.f32.mrb[0].mxu0
  %v260 = vadd.f32 %v61, %v259
  %v261 = vpop.f32.mrb[0].mxu0
  %262 = vmatprep.mubr.f32.mxu0 0.0
  %263 = vmatmul.mubr.f32.gmra.mrb[0].mxu0 %v100
  %v264 = vpop.f32.mrb[0].mxu0
  %v265 = vadd.f32 %v61, %v264
  %v266 = vpop.f32.mrb[0].mxu0
  %267 = vmatprep.mubr.f32.mxu0 0.0
  %268 = vmatmul.mubr.f32.gmra.mrb[0].mxu0 %v103
  %v269 = vpop.f32.mrb[0].mxu0
  %v270 = vadd.f32 %v61, %v269
  %v271 = vpop.f32.mrb[0].mxu0
  %272 = vmatprep.mubr.f32.mxu0 0.0
  %273 = vmatmul.mubr.f32.gmra.mrb[0].mxu0 %v106
  %v274 = vpop.f32.mrb[0].mxu0
  %v275 = vadd.f32 %v61, %v274
  %v276 = vpop.f32.mrb[0].mxu0
  %277 = vmatprep.mubr.f32.mxu0 0.0
  %278 = vmatmul.mubr.f32.gmra.mrb[0].mxu0 %v109
  %v279 = vpop.f32.mrb[0].mxu0
  %v280 = vadd.f32 %v61, %v279
  %v281 = vpop.f32.mrb[0].mxu0
  %282 = vmatprep.mubr.f32.mxu0 0.0
  %283 = vmatmul.mubr.f32.gmra.mrb[0].mxu0 %v112
  %v284 = vpop.f32.mrb[0].mxu0
  %v285 = vadd.f32 %v61, %v284
  %v286 = vpop.f32.mrb[0].mxu0
  %287 = vmatprep.mubr.f32.mxu0 0.0
  %288 = vmatmul.mubr.f32.gmra.mrb[0].mxu0 %v115
  %v289 = vpop.f32.mrb[0].mxu0
  %v290 = vadd.f32 %v61, %v289
  %v291 = vpop.f32.mrb[0].mxu0
  %292 = vmatprep.mubr.f32.mxu0 0.0
  %293 = vmatmul.mubr.f32.gmra.mrb[0].mxu0 %v118
  %v294 = vpop.f32.mrb[0].mxu0
  %v295 = vadd.f32 %v61, %v294
  %v296 = vpop.f32.mrb[0].mxu0
  %297 = vmatprep.mubr.f32.mxu0 0.0
  %298 = vmatmul.mubr.f32.gmra.mrb[0].mxu0 %v121
  %v299 = vpop.f32.mrb[0].mxu0
  %v300 = vadd.f32 %v61, %v299
  %v301 = vpop.f32.mrb[0].mxu0
  %302 = vmatprep.mubr.f32.mxu0 0.0
  %303 = vmatmul.mubr.f32.gmra.mrb[0].mxu0 %v124
  %v304 = vpop.f32.mrb[0].mxu0
  %v305 = vadd.f32 %v61, %v304
  %v306 = vpop.f32.mrb[0].mxu0
  %307 = vmatprep.mubr.f32.mxu0 0.0
  %308 = vmatmul.mubr.f32.gmra.mrb[0].mxu0 %v127
  %v309 = vpop.f32.mrb[0].mxu0
  %v310 = vadd.f32 %v61, %v309
  %v311 = vpop.f32.mrb[0].mxu0
  %312 = vmatprep.mubr.f32.mxu0 0.0
  %313 = vmatmul.mubr.f32.gmra.mrb[0].mxu0 %v130
  %v314 = vpop.f32.mrb[0].mxu0
  %v315 = vadd.f32 %v61, %v314
  %v316 = vpop.f32.mrb[0].mxu0
  %317 = vmatprep.mubr.f32.mxu0 0.0
  %318 = vmatmul.mubr.f32.gmra.mrb[0].mxu0 %v133
  %v319 = vpop.f32.mrb[0].mxu0
  %v320 = vadd.f32 %v61, %v319
  %v321 = vpop.f32.mrb[0].mxu0
  %322 = vmatprep.mubr.f32.mxu0 0.0
  %323 = vmatmul.mubr.f32.gmra.mrb[0].mxu0 %v136
  %v324 = vpop.f32.mrb[0].mxu0
  %v325 = vadd.f32 %v61, %v324
  %v326 = vpop.f32.mrb[0].mxu0
  %327 = vdwg.mxu0
  %v328 = vmax.f32 %v205, 0.0
  %v329 = vmax.f32 %v210, 0.0
  %v330 = vmax.f32 %v215, 0.0
  %v331 = vmax.f32 %v220, 0.0
  %v332 = vmax.f32 %v225, 0.0
  %v333 = vmax.f32 %v230, 0.0
  %v334 = vmax.f32 %v235, 0.0
  %v335 = vmax.f32 %v240, 0.0
  %v336 = vmax.f32 %v245, 0.0
  %v337 = vmax.f32 %v250, 0.0
  %v338 = vmax.f32 %v255, 0.0
  %v339 = vmax.f32 %v260, 0.0
  %v340 = vmax.f32 %v265, 0.0
  %v341 = vmax.f32 %v270, 0.0
  %v342 = vmax.f32 %v275, 0.0
  %v343 = vmax.f32 %v280, 0.0
  %v344 = vmax.f32 %v285, 0.0
  %v345 = vmax.f32 %v290, 0.0
  %v346 = vmax.f32 %v295, 0.0
  %v347 = vmax.f32 %v300, 0.0
  %v348 = vmax.f32 %v305, 0.0
  %v349 = vmax.f32 %v310, 0.0
  %v350 = vmax.f32 %v315, 0.0
  %v351 = vmax.f32 %v320, 0.0
  %v352 = vmax.f32 %v325, 0.0
  %v353 = vlaneseq
  %v354 = vshrl.u32 %v353, 7
  %v355 = vsub.s32 0, %v354
  %v356 = vrot.slane %v57, %v355
  %357 = vmatprep.subr.mxu0 0.0
  %358 = vmatpush1.msra.mxu0 %v41
  %359 = vmatprep.subr.mxu0 0.0
  %360 = vmatpush1.msra.mxu0 %v42
  %361 = vmatprep.subr.mxu0 0.0
  %362 = vmatpush1.msra.mxu0 %v43
  %363 = vmatprep.subr.mxu0 0.0
  %364 = vmatpush1.msra.mxu0 %v44
  %365 = vmatprep.subr.mxu0 0.0
  %366 = vmatpush1.msra.mxu0 %v45
  %367 = vmatprep.subr.mxu0 0.0
  %368 = vmatpush1.msra.mxu0 %v46
  %369 = vmatprep.subr.mxu0 0.0
  %370 = vmatpush1.msra.mxu0 %v47
  %371 = vmatprep.subr.mxu0 0.0
  %372 = vmatpush1.msra.mxu0 %v48
  %373 = vmatprep.subr.mxu0 0.0
  %374 = vmatpush1.msra.mxu0 %v49
  %375 = vmatprep.subr.mxu0 0.0
  %376 = vmatpush1.msra.mxu0 %v50
  %377 = vmatprep.subr.mxu0 0.0
  %378 = vmatpush1.msra.mxu0 %v51
  %379 = vmatprep.subr.mxu0 0.0
  %380 = vmatpush1.msra.mxu0 %v52
  %381 = vmatprep.subr.mxu0 0.0
  %382 = vmatpush1.msra.mxu0 %v53
  %383 = vmatprep.subr.mxu0 0.0
  %384 = vmatpush1.msra.mxu0 %v54
  %385 = vmatprep.subr.mxu0 0.0
  %386 = vmatpush1.msra.mxu0 %v55
  %387 = vmatprep.subr.mxu0 0.0
  %388 = vmatpush1.msra.mxu0 %v56
  %389 = vmatprep.subr.mxu0 0.0
  %390 = vmatpush1.msra.mxu0 0.0
  %391 = vmatprep.subr.mxu0 0.0
  %392 = vmatpush1.msra.mxu0 0.0
  %393 = vmatprep.subr.mxu0 0.0
  %394 = vmatpush1.msra.mxu0 0.0
  %395 = vmatprep.subr.mxu0 0.0
  %396 = vmatpush1.msra.mxu0 0.0
  %397 = vmatprep.subr.mxu0 0.0
  %398 = vmatpush1.msra.mxu0 0.0
  %399 = vmatprep.subr.mxu0 0.0
  %400 = vmatpush1.msra.mxu0 0.0
  %401 = vmatprep.subr.mxu0 0.0
  %402 = vmatpush1.msra.mxu0 0.0
  %403 = vmatprep.subr.mxu0 0.0
  %404 = vmatpush1.msra.mxu0 0.0
  %405 = vmatprep.subr.mxu0 0.0
  %406 = vmatpush1.msra.mxu0 0.0
  %407 = vmatprep.subr.mxu0 0.0
  %408 = vmatpush1.msra.mxu0 0.0
  %409 = vmatprep.subr.mxu0 0.0
  %410 = vmatpush1.msra.mxu0 0.0
  %411 = vmatprep.subr.mxu0 0.0
  %412 = vmatpush1.msra.mxu0 0.0
  %413 = vmatprep.subr.mxu0 0.0
  %414 = vmatpush1.msra.mxu0 0.0
  %415 = vmatprep.subr.mxu0 0.0
  %416 = vmatpush1.msra.mxu0 0.0
  %417 = vmatprep.subr.mxu0 0.0
  %418 = vmatpush1.msra.mxu0 0.0
  %419 = vmatprep.subr.mxu0 0.0
  %420 = vmatpush1.msra.mxu0 0.0
  %421 = vmatprep.mubr.f32.mxu0 0.0
  %422 = vmatmul.mubr.f32.gmra.mrb[0].mxu0 %v328
  %v423 = vpop.f32.mrb[0].mxu0
  %v424 = vadd.f32 %v356, %v423
  %v425 = vpop.f32.mrb[0].mxu0
  %426 = vmatprep.mubr.f32.mxu0 0.0
  %427 = vmatmul.mubr.f32.gmra.mrb[0].mxu0 %v329
  %v428 = vpop.f32.mrb[0].mxu0
  %v429 = vadd.f32 %v356, %v428
  %v430 = vpop.f32.mrb[0].mxu0
  %431 = vmatprep.mubr.f32.mxu0 0.0
  %432 = vmatmul.mubr.f32.gmra.mrb[0].mxu0 %v330
  %v433 = vpop.f32.mrb[0].mxu0
  %v434 = vadd.f32 %v356, %v433
  %v435 = vpop.f32.mrb[0].mxu0
  %436 = vmatprep.mubr.f32.mxu0 0.0
  %437 = vmatmul.mubr.f32.gmra.mrb[0].mxu0 %v331
  %v438 = vpop.f32.mrb[0].mxu0
  %v439 = vadd.f32 %v356, %v438
  %v440 = vpop.f32.mrb[0].mxu0
  %441 = vmatprep.mubr.f32.mxu0 0.0
  %442 = vmatmul.mubr.f32.gmra.mrb[0].mxu0 %v332
  %v443 = vpop.f32.mrb[0].mxu0
  %v444 = vadd.f32 %v356, %v443
  %v445 = vpop.f32.mrb[0].mxu0
  %446 = vmatprep.mubr.f32.mxu0 0.0
  %447 = vmatmul.mubr.f32.gmra.mrb[0].mxu0 %v333
  %v448 = vpop.f32.mrb[0].mxu0
  %v449 = vadd.f32 %v356, %v448
  %v450 = vpop.f32.mrb[0].mxu0
  %451 = vmatprep.mubr.f32.mxu0 0.0
  %452 = vmatmul.mubr.f32.gmra.mrb[0].mxu0 %v334
  %v453 = vpop.f32.mrb[0].mxu0
  %v454 = vadd.f32 %v356, %v453
  %v455 = vpop.f32.mrb[0].mxu0
  %456 = vmatprep.mubr.f32.mxu0 0.0
  %457 = vmatmul.mubr.f32.gmra.mrb[0].mxu0 %v335
  %v458 = vpop.f32.mrb[0].mxu0
  %v459 = vadd.f32 %v356, %v458
  %v460 = vpop.f32.mrb[0].mxu0
  %461 = vmatprep.mubr.f32.mxu0 0.0
  %462 = vmatmul.mubr.f32.gmra.mrb[0].mxu0 %v336
  %v463 = vpop.f32.mrb[0].mxu0
  %v464 = vadd.f32 %v356, %v463
  %v465 = vpop.f32.mrb[0].mxu0
  %466 = vmatprep.mubr.f32.mxu0 0.0
  %467 = vmatmul.mubr.f32.gmra.mrb[0].mxu0 %v337
  %v468 = vpop.f32.mrb[0].mxu0
  %v469 = vadd.f32 %v356, %v468
  %v470 = vpop.f32.mrb[0].mxu0
  %471 = vmatprep.mubr.f32.mxu0 0.0
  %472 = vmatmul.mubr.f32.gmra.mrb[0].mxu0 %v338
  %v473 = vpop.f32.mrb[0].mxu0
  %v474 = vadd.f32 %v356, %v473
  %v475 = vpop.f32.mrb[0].mxu0
  %476 = vmatprep.mubr.f32.mxu0 0.0
  %477 = vmatmul.mubr.f32.gmra.mrb[0].mxu0 %v339
  %v478 = vpop.f32.mrb[0].mxu0
  %v479 = vadd.f32 %v356, %v478
  %v480 = vpop.f32.mrb[0].mxu0
  %481 = vmatprep.mubr.f32.mxu0 0.0
  %482 = vmatmul.mubr.f32.gmra.mrb[0].mxu0 %v340
  %v483 = vpop.f32.mrb[0].mxu0
  %v484 = vadd.f32 %v356, %v483
  %v485 = vpop.f32.mrb[0].mxu0
  %486 = vmatprep.mubr.f32.mxu0 0.0
  %487 = vmatmul.mubr.f32.gmra.mrb[0].mxu0 %v341
  %v488 = vpop.f32.mrb[0].mxu0
  %v489 = vadd.f32 %v356, %v488
  %v490 = vpop.f32.mrb[0].mxu0
  %491 = vmatprep.mubr.f32.mxu0 0.0
  %492 = vmatmul.mubr.f32.gmra.mrb[0].mxu0 %v342
  %v493 = vpop.f32.mrb[0].mxu0
  %v494 = vadd.f32 %v356, %v493
  %v495 = vpop.f32.mrb[0].mxu0
  %496 = vmatprep.mubr.f32.mxu0 0.0
  %497 = vmatmul.mubr.f32.gmra.mrb[0].mxu0 %v343
  %v498 = vpop.f32.mrb[0].mxu0
  %v499 = vadd.f32 %v356, %v498
  %v500 = vpop.f32.mrb[0].mxu0
  %501 = vmatprep.mubr.f32.mxu0 0.0
  %502 = vmatmul.mubr.f32.gmra.mrb[0].mxu0 %v344
  %v503 = vpop.f32.mrb[0].mxu0
  %v504 = vadd.f32 %v356, %v503
  %v505 = vpop.f32.mrb[0].mxu0
  %506 = vmatprep.mubr.f32.mxu0 0.0
  %507 = vmatmul.mubr.f32.gmra.mrb[0].mxu0 %v345
  %v508 = vpop.f32.mrb[0].mxu0
  %v509 = vadd.f32 %v356, %v508
  %v510 = vpop.f32.mrb[0].mxu0
  %511 = vmatprep.mubr.f32.mxu0 0.0
  %512 = vmatmul.mubr.f32.gmra.mrb[0].mxu0 %v346
  %v513 = vpop.f32.mrb[0].mxu0
  %v514 = vadd.f32 %v356, %v513
  %v515 = vpop.f32.mrb[0].mxu0
  %516 = vmatprep.mubr.f32.mxu0 0.0
  %517 = vmatmul.mubr.f32.gmra.mrb[0].mxu0 %v347
  %v518 = vpop.f32.mrb[0].mxu0
  %v519 = vadd.f32 %v356, %v518
  %v520 = vpop.f32.mrb[0].mxu0
  %521 = vmatprep.mubr.f32.mxu0 0.0
  %522 = vmatmul.mubr.f32.gmra.mrb[0].mxu0 %v348
  %v523 = vpop.f32.mrb[0].mxu0
  %v524 = vadd.f32 %v356, %v523
  %v525 = vpop.f32.mrb[0].mxu0
  %526 = vmatprep.mubr.f32.mxu0 0.0
  %527 = vmatmul.mubr.f32.gmra.mrb[0].mxu0 %v349
  %v528 = vpop.f32.mrb[0].mxu0
  %v529 = vadd.f32 %v356, %v528
  %v530 = vpop.f32.mrb[0].mxu0
  %531 = vmatprep.mubr.f32.mxu0 0.0
  %532 = vmatmul.mubr.f32.gmra.mrb[0].mxu0 %v350
  %v533 = vpop.f32.mrb[0].mxu0
  %v534 = vadd.f32 %v356, %v533
  %v535 = vpop.f32.mrb[0].mxu0
  %536 = vmatprep.mubr.f32.mxu0 0.0
  %537 = vmatmul.mubr.f32.gmra.mrb[0].mxu0 %v351
  %v538 = vpop.f32.mrb[0].mxu0
  %v539 = vadd.f32 %v356, %v538
  %v540 = vpop.f32.mrb[0].mxu0
  %541 = vmatprep.mubr.f32.mxu0 0.0
  %542 = vmatmul.mubr.f32.gmra.mrb[0].mxu0 %v352
  %v543 = vpop.f32.mrb[0].mxu0
  %v544 = vadd.f32 %v356, %v543
  %v545 = vpop.f32.mrb[0].mxu0
  %546 = vdwg.mxu0
  %547 = vst [vmem:[%s2] sm:$0xff] %v424
  %548 = vst [vmem:[%s2 + $0x8] sm:$0xff] %v429
  %549 = vst [vmem:[%s2 + $0x10] sm:$0xff] %v434
  %550 = vst [vmem:[%s2 + $0x18] sm:$0xff] %v439
  %551 = vst [vmem:[%s2 + $0x20] sm:$0xff] %v444
  %552 = vst [vmem:[%s2 + $0x28] sm:$0xff] %v449
  %553 = vst [vmem:[%s2 + $0x30] sm:$0xff] %v454
  %554 = vst [vmem:[%s2 + $0x38] sm:$0xff] %v459
  %555 = vst [vmem:[%s2 + $0x40] sm:$0xff] %v464
  %556 = vst [vmem:[%s2 + $0x48] sm:$0xff] %v469
  %557 = vst [vmem:[%s2 + $0x50] sm:$0xff] %v474
  %558 = vst [vmem:[%s2 + $0x58] sm:$0xff] %v479
  %559 = vst [vmem:[%s2 + $0x60] sm:$0xff] %v484
  %560 = vst [vmem:[%s2 + $0x68] sm:$0xff] %v489
  %561 = vst [vmem:[%s2 + $0x70] sm:$0xff] %v494
  %562 = vst [vmem:[%s2 + $0x78] sm:$0xff] %v499
  %563 = vst [vmem:[%s2 + $0x80] sm:$0xff] %v504
  %564 = vst [vmem:[%s2 + $0x88] sm:$0xff] %v509
  %565 = vst [vmem:[%s2 + $0x90] sm:$0xff] %v514
  %566 = vst [vmem:[%s2 + $0x98] sm:$0xff] %v519
  %567 = vst [vmem:[%s2 + $0xa0] sm:$0xff] %v524
  %568 = vst [vmem:[%s2 + $0xa8] sm:$0xff] %v529
  %569 = vst [vmem:[%s2 + $0xb0] sm:$0xff] %v534
  %570 = vst [vmem:[%s2 + $0xb8] sm:$0xff] %v539
  %571 = vst [vmem:[%s2 + $0xc0] sm:$0xff] %v544
  // Predicated region
  $region10: #{reparam_forward.1} parent=0 // pred_check
    _
  $region11: #{reparam_forward.1} parent=0 // pred_check_branch
    %573 = sbr.rel (0) target = $region13
  $region12: #{reparam_forward.1} parent=0 // pred_region
    _
  $region13: #{reparam_forward.1} parent=0 // pred_fallthru
    _
  // Predicated region
  $region14: #{reparam_forward.1} parent=0 // pred_check
    _
  $region15: #{reparam_forward.1} parent=0 // pred_check_branch
    %575 = sbr.rel (0) target = $region17
  $region16: #{reparam_forward.1} parent=0 // pred_region
    _
  $region17: #{reparam_forward.1} parent=0 // pred_fallthru
    _

</llo_original>
